<compile_context>
chip_gen: v6e
topology: v6e:2x2x1
jax: 0.10.0
libtpu: 0.0.40
codegen_flags: <defaults>
</compile_context>

<pallas_src>
import functools

import jax
import jax.numpy as jnp
from jax.experimental import pallas as pl
from jax.experimental.pallas import tpu as pltpu

LEAKY_SLOPE = 0.01   # PyTorch nn.LeakyReLU default negative_slope
LANE = 128           # lane width: pad feature dims to multiples of this
SUBLANE_BF16 = 16    # bf16 sublane packing: pad batch to multiples of this


def _round_up(n: int, m: int) -> int:
    return ((n + m - 1) // m) * m


def _mlp_layer_kernel(x_ref, w0_ref, wstack_ref, bstack_ref, o_ref, h_ref):
    """One grid step == one (Linear + LeakyReLU) layer.

    x_ref:      (B_pad, d_in)      bf16, resident (only read at layer 0)
    w0_ref:     (d_in, D_pad)      bf16, resident (layer-0 weight, unpadded K)
    wstack_ref: (1, D_pad, D_pad)  bf16, stacked weight block max(l-1, 0)
    bstack_ref: (1, 1, D_pad)      f32, bias of layer l
    o_ref:      (B_pad, D_pad)     f32, resident output (written at last layer)
    h_ref:      (B_pad, D_pad)     f32 VMEM scratch carrying the activation
    """
    l = pl.program_id(0)
    b = bstack_ref[0]  # (1, D_pad) f32, broadcasts over the batch

    @pl.when(l == 0)
    def _():
        y = jnp.dot(x_ref[...], w0_ref[...],
                    preferred_element_type=jnp.float32) + b
        h_ref[...] = jnp.maximum(y, LEAKY_SLOPE * y)

    @pl.when(l > 0)
    def _():
        h_bf16 = h_ref[...].astype(jnp.bfloat16)
        y = jnp.dot(h_bf16, wstack_ref[0],
                    preferred_element_type=jnp.float32) + b
        h_ref[...] = jnp.maximum(y, LEAKY_SLOPE * y)

    @pl.when(l == pl.num_programs(0) - 1)
    def _():
        o_ref[...] = h_ref[...]


def init_fully_connected(key, input_dim, hidden_layer_dims, output_dim):
    """nn.Linear-style init U(-1/sqrt(fan_in), 1/sqrt(fan_in)).

    Weights are stored pre-transposed as (in_features, out_features) in bf16.
    Layer 0 keeps its true contraction dim (only N padded); layers 1..L-1 are
    zero-padded to a common (D_pad, D_pad) and stacked so the kernel can index
    them with a layer grid.  Zero padding is exact through Linear(+0 bias) and
    LeakyReLU, so padded columns stay 0.
    """
    dims = [input_dim] + list(hidden_layer_dims) + [output_dim]
    num_layers = len(dims) - 1
    d_pad = _round_up(max(dims[1:]), LANE)  # shared padded activation width

    w0 = None
    w_rest = []
    b_all = []
    for i in range(num_layers):
        fan_in, fan_out = dims[i], dims[i + 1]
        key, kw, kb = jax.random.split(key, 3)
        bound = 1.0 / (fan_in ** 0.5)
        w = jax.random.uniform(kw, (fan_in, fan_out), jnp.float32, -bound, bound)
        bias = jax.random.uniform(kb, (fan_out,), jnp.float32, -bound, bound)

        b_all.append(jnp.zeros((1, d_pad), jnp.float32).at[0, :fan_out].set(bias))
        w_bf16 = w.astype(jnp.bfloat16)
        if i == 0:
            # Layer 0: do NOT pad K (= input_dim); pad only the output dim.
            w0 = jnp.zeros((fan_in, d_pad), jnp.bfloat16).at[:, :fan_out].set(w_bf16)
        else:
            wp = jnp.zeros((d_pad, d_pad), jnp.bfloat16)
            w_rest.append(wp.at[:fan_in, :fan_out].set(w_bf16))

    if w_rest:
        w_stack = jnp.stack(w_rest)                              # (L-1, D_pad, D_pad)
    else:
        w_stack = jnp.zeros((1, d_pad, d_pad), jnp.bfloat16)     # dummy, never read
    b_stack = jnp.stack(b_all)                                   # (L, 1, D_pad)
    return (w0, w_stack, b_stack), dims


@functools.partial(jax.jit, static_argnums=(2,))
def fully_connected_forward(x, params, output_dim):
    """Single Pallas call (grid over layers) for the whole MLP -> (B, output_dim)."""
    w0, w_stack, b_stack = params
    B, d_in = x.shape
    num_layers = b_stack.shape[0]
    d_pad = w0.shape[1]
    B_pad = _round_up(max(B, SUBLANE_BF16), SUBLANE_BF16)

    # Pad only the batch dim; cast to bf16 for the MXU.  Padded rows are dead
    # values that get sliced away at the end.
    x_p = jnp.zeros((B_pad, d_in), jnp.bfloat16).at[:B].set(x.astype(jnp.bfloat16))

    grid_spec = pltpu.PrefetchScalarGridSpec(
        num_scalar_prefetch=0,
        grid=(num_layers,),
        in_specs=[
            # Resident across all layers.
            pl.BlockSpec((B_pad, d_in), lambda l: (0, 0)),
            pl.BlockSpec(w0.shape, lambda l: (0, 0)),
            # Layer l>0 uses stacked weight l-1; at l=0 this fetch is exactly
            # the layer-1 prefetch, so it overlaps layer 0's matmul.
            pl.BlockSpec((1, d_pad, d_pad),
                         lambda l: (jnp.maximum(l - 1, 0), 0, 0)),
            pl.BlockSpec((1, 1, d_pad), lambda l: (l, 0, 0)),
        ],
        out_specs=pl.BlockSpec((B_pad, d_pad), lambda l: (0, 0)),
        scratch_shapes=[pltpu.VMEM((B_pad, d_pad), jnp.float32)],
    )

    out_pad = pl.pallas_call(
        _mlp_layer_kernel,
        out_shape=jax.ShapeDtypeStruct((B_pad, d_pad), jnp.float32),
        grid_spec=grid_spec,
        compiler_params=pltpu.CompilerParams(
            dimension_semantics=("arbitrary",)),  # sequential layer dependency
    )(x_p, w0, w_stack, b_stack)

    return out_pad[:B, :output_dim]


def _reference_forward(x, params, dims, output_dim):
    """Pure-JAX reference mirroring the kernel math (bf16 dot, f32 everything else)."""
    w0, w_stack, b_stack = params
    h = x.astype(jnp.float32)
    for i in range(len(dims) - 1):
        w = w0 if i == 0 else w_stack[i - 1]
        y = jnp.dot(h.astype(jnp.bfloat16), w,
                    preferred_element_type=jnp.float32) + b_stack[i, 0]
        h = jnp.maximum(y, LEAKY_SLOPE * y)
    return h[:, :output_dim]


if __name__ == "__main__":
    key = jax.random.PRNGKey(0)
    k_params, k_x = jax.random.split(key)

    batch = 8
    input_dim = 32
    hidden_layer_dims = [64, 48]
    output_dim = 16

    params, dims = init_fully_connected(k_params, input_dim, hidden_layer_dims,
                                        output_dim)
    x = jax.random.normal(k_x, (batch, input_dim), jnp.float32)

    out = fully_connected_forward(x, params, output_dim)
    out = jax.block_until_ready(out)

    ref = _reference_forward(x, params, dims, output_dim)
    assert out.shape == (batch, output_dim)
    assert jnp.allclose(out, ref, atol=1e-4, rtol=1e-4), (
        float(jnp.max(jnp.abs(out - ref))))

    print("KERNEL_OK")
</pallas_src>

<mosaic_0001>
module attributes {stable_mosaic.version = 11 : i64} {
  func.func @_mlp_layer_kernel(%arg0: i32, %arg1: memref<16x32xbf16, #tpu.memory_space<vmem>>, %arg2: memref<32x128xbf16, #tpu.memory_space<vmem>>, %arg3: memref<1x128x128xbf16, #tpu.memory_space<vmem>>, %arg4: memref<1x1x128xf32, #tpu.memory_space<vmem>>, %arg5: memref<16x128xf32, #tpu.memory_space<vmem>>, %arg6: memref<16x128xf32, #tpu.memory_space<vmem>>) attributes {dimension_semantics = [#tpu.dimension_semantics<arbitrary>], iteration_bounds = array<i64: 3>, scalar_prefetch = 0 : i64, scratch_operands = 1 : i64, tpu.core_type = #tpu.core_type<tc>, window_params = [{pipeline_mode = #tpu.pipeline_mode<synchronous>, transform_indices = @transform_0, window_bounds = array<i64: 16, 32>}, {pipeline_mode = #tpu.pipeline_mode<synchronous>, transform_indices = @transform_1, window_bounds = array<i64: 32, 128>}, {transform_indices = @transform_2, window_bounds = array<i64: 1, 128, 128>}, {transform_indices = @transform_3, window_bounds = array<i64: 1, 1, 128>}, {pipeline_mode = #tpu.pipeline_mode<synchronous>, transform_indices = @transform_4, window_bounds = array<i64: 16, 128>}]} {
    %c0 = arith.constant 0 : index
    %c0_0 = arith.constant 0 : index
    %c0_1 = arith.constant 0 : index
    %0 = vector.load %arg4[%c0, %c0_0, %c0_1] : memref<1x1x128xf32, #tpu.memory_space<vmem>>, vector<1x1x128xf32>
    %1 = vector.shape_cast %0 : vector<1x1x128xf32> to vector<1x128xf32>
    %c0_i32 = arith.constant 0 : i32
    %2 = arith.cmpi eq, %arg0, %c0_i32 : i32
    %3 = arith.extui %2 : i1 to i32
    %c0_i32_2 = arith.constant 0 : i32
    %4 = arith.cmpi ne, %3, %c0_i32_2 : i32
    scf.if %4 {
      %c0_6 = arith.constant 0 : index
      %c0_7 = arith.constant 0 : index
      %11 = vector.load %arg1[%c0_6, %c0_7] : memref<16x32xbf16, #tpu.memory_space<vmem>>, vector<16x32xbf16>
      %c0_8 = arith.constant 0 : index
      %c0_9 = arith.constant 0 : index
      %12 = vector.load %arg2[%c0_8, %c0_9] : memref<32x128xbf16, #tpu.memory_space<vmem>>, vector<32x128xbf16>
      %cst = arith.constant dense<0.000000e+00> : vector<16x128xf32>
      %13 = tpu.matmul %11, %12, %cst {dimension_numbers = #tpu.dot_dimension_numbers<[1], [0], [0], [1], [0, 0, 1, 1], [], []>} : vector<16x32xbf16>, vector<32x128xbf16>, vector<16x128xf32> -> vector<16x128xf32>
      %14 = vector.broadcast %1 : vector<1x128xf32> to vector<16x128xf32>
      %15 = arith.addf %13, %14 : vector<16x128xf32>
      %cst_10 = arith.constant 0.00999999977 : f32
      %16 = vector.broadcast %cst_10 : f32 to vector<16x128xf32>
      %17 = arith.mulf %16, %15 : vector<16x128xf32>
      %18 = arith.maximumf %15, %17 : vector<16x128xf32>
      %c0_11 = arith.constant 0 : index
      %c0_12 = arith.constant 0 : index
      %19 = vector.load %arg6[%c0_11, %c0_12] : memref<16x128xf32, #tpu.memory_space<vmem>>, vector<16x128xf32>
      tpu.vector_store %arg6[%c0_11, %c0_12], %18 {strides = array<i32>} : memref<16x128xf32, #tpu.memory_space<vmem>>, vector<16x128xf32>,
    } else {
    }
    %c0_i32_3 = arith.constant 0 : i32
    %5 = arith.cmpi sgt, %arg0, %c0_i32_3 : i32
    %6 = arith.extui %5 : i1 to i32
    %c0_i32_4 = arith.constant 0 : i32
    %7 = arith.cmpi ne, %6, %c0_i32_4 : i32
    scf.if %7 {
      %c0_6 = arith.constant 0 : index
      %c0_7 = arith.constant 0 : index
      %11 = vector.load %arg6[%c0_6, %c0_7] : memref<16x128xf32, #tpu.memory_space<vmem>>, vector<16x128xf32>
      %12 = arith.truncf %11 : vector<16x128xf32> to vector<16x128xbf16>
      %c0_8 = arith.constant 0 : index
      %c0_9 = arith.constant 0 : index
      %c0_10 = arith.constant 0 : index
      %13 = vector.load %arg3[%c0_8, %c0_9, %c0_10] : memref<1x128x128xbf16, #tpu.memory_space<vmem>>, vector<1x128x128xbf16>
      %14 = vector.shape_cast %13 : vector<1x128x128xbf16> to vector<128x128xbf16>
      %cst = arith.constant dense<0.000000e+00> : vector<16x128xf32>
      %15 = tpu.matmul %12, %14, %cst {dimension_numbers = #tpu.dot_dimension_numbers<[1], [0], [0], [1], [0, 0, 1, 1], [], []>} : vector<16x128xbf16>, vector<128x128xbf16>, vector<16x128xf32> -> vector<16x128xf32>
      %16 = vector.broadcast %1 : vector<1x128xf32> to vector<16x128xf32>
      %17 = arith.addf %15, %16 : vector<16x128xf32>
      %cst_11 = arith.constant 0.00999999977 : f32
      %18 = vector.broadcast %cst_11 : f32 to vector<16x128xf32>
      %19 = arith.mulf %18, %17 : vector<16x128xf32>
      %20 = arith.maximumf %17, %19 : vector<16x128xf32>
      %c0_12 = arith.constant 0 : index
      %c0_13 = arith.constant 0 : index
      %21 = vector.load %arg6[%c0_12, %c0_13] : memref<16x128xf32, #tpu.memory_space<vmem>>, vector<16x128xf32>
      tpu.vector_store %arg6[%c0_12, %c0_13], %20 {strides = array<i32>} : memref<16x128xf32, #tpu.memory_space<vmem>>, vector<16x128xf32>,
    } else {
    }
    %c2_i32 = arith.constant 2 : i32
    %8 = arith.cmpi eq, %arg0, %c2_i32 : i32
    %9 = arith.extui %8 : i1 to i32
    %c0_i32_5 = arith.constant 0 : i32
    %10 = arith.cmpi ne, %9, %c0_i32_5 : i32
    scf.if %10 {
      %c0_6 = arith.constant 0 : index
      %c0_7 = arith.constant 0 : index
      %11 = vector.load %arg6[%c0_6, %c0_7] : memref<16x128xf32, #tpu.memory_space<vmem>>, vector<16x128xf32>
      %c0_8 = arith.constant 0 : index
      %c0_9 = arith.constant 0 : index
      %12 = vector.load %arg5[%c0_8, %c0_9] : memref<16x128xf32, #tpu.memory_space<vmem>>, vector<16x128xf32>
      tpu.vector_store %arg5[%c0_8, %c0_9], %11 {strides = array<i32>} : memref<16x128xf32, #tpu.memory_space<vmem>>, vector<16x128xf32>,
    } else {
    }
    return
  }
  func.func @transform_0(%arg0: i32) -> (i32, i32) {
    %c0_i32 = arith.constant 0 : i32
    %c0_i32_0 = arith.constant 0 : i32
    %c0_i32_1 = arith.constant 0 : i32
    return %c0_i32, %c0_i32_0 : i32, i32
  }
  func.func @transform_1(%arg0: i32) -> (i32, i32) {
    %c0_i32 = arith.constant 0 : i32
    %c0_i32_0 = arith.constant 0 : i32
    %c0_i32_1 = arith.constant 0 : i32
    return %c0_i32, %c0_i32_0 : i32, i32
  }
  func.func @transform_2(%arg0: i32) -> (i32, i32, i32) {
    %c1_i32 = arith.constant 1 : i32
    %0 = arith.subi %arg0, %c1_i32 : i32
    %c0_i32 = arith.constant 0 : i32
    %1 = arith.maxsi %0, %c0_i32 : i32
    %c0_i32_0 = arith.constant 0 : i32
    %c0_i32_1 = arith.constant 0 : i32
    %c0_i32_2 = arith.constant 0 : i32
    return %1, %c0_i32_0, %c0_i32_1 : i32, i32, i32
  }
  func.func @transform_3(%arg0: i32) -> (i32, i32, i32) {
    %c0_i32 = arith.constant 0 : i32
    %c0_i32_0 = arith.constant 0 : i32
    %c0_i32_1 = arith.constant 0 : i32
    return %arg0, %c0_i32, %c0_i32_0 : i32, i32, i32
  }
  func.func @transform_4(%arg0: i32) -> (i32, i32) {
    %c0_i32 = arith.constant 0 : i32
    %c0_i32_0 = arith.constant 0 : i32
    %c0_i32_1 = arith.constant 0 : i32
    return %c0_i32, %c0_i32_0 : i32, i32
  }
}

</mosaic_0001>

<llo_original>
// kernel: fully_connected_forward.1
$region0: #{fully_connected_forward.1}
  #allocation0 [shape = 'u32[]', space=smem, size = 0x4, offset = 0x4, fixed_abs, tag = 'smem constant byte address 0x4 - core index']
  #allocation1 [shape = 'u32[144,128]{1,0:T(1,128)}', space=vmem, size = 0x12000, scoped, tag = 'internal scratch']
  #allocation2 [shape = 'f32[16,128]{1,0:T(8,128)}', space=vmem, size = 0x2000, scoped, tag = 'scratch operand']
  %s0 = inlined_call_operand.vmem [shape: bf16[16,32], index: 0, kind: input, shape index: {}]
  %s1 = inlined_call_operand.vmem [shape: bf16[32,128], index: 1, kind: input, shape index: {}]
  %s2 = inlined_call_operand.hbm [shape: bf16[2,128,128], index: 2, kind: input, shape index: {}]
  %s3 = inlined_call_operand.vmem [shape: f32[3,1,128], index: 3, kind: input, shape index: {}]
  %s4 = inlined_call_operand.vmem [shape: f32[16,128], index: 4, kind: output, shape index: {}]
  %s5 = sld [smem:[#allocation0]]
  $region65: #{fully_connected_forward.1} parent=0
    _
  %s7 = ssub.s32 1, %s5
  %s8 = scalar_select 0, %s7, %s5
  $region1: #{fully_connected_forward.1} parent=0
    #allocation3 [shape = 'u8[65536]{0}', space=vmem, size = 0x10000, scoped, tag = 'input window, operand 2']
    #allocation4 [shape = 's32[2]{0}', space=sflag, size = 0x8, scoped, tag = 'scoped memory for fully_connected_forward.1']
    %9 = vsyncpa [#allocation4], 0
    %s10 = scalar_lea.sflag [#allocation4], 1
    %11 = vsyncpa %s10, 0
    loop: start=0, step=1, limit=5
    $region2: #{fully_connected_forward.1} parent=1 // loop_pre_header
      _
    $region3: #{fully_connected_forward.1} parent=1 // loop_header
      %s13 = sphi 0, %s17
      %p14 = scmp.ge.s32.totalorder %s13, 5
      %s21 = sphi 0, %s21
      %s23 = sphi 0, %s21
      %s24 = sphi 0, %s23
      %s38 = sphi 0, %s24
      %s42 = sphi 0, %s42
      %s44 = sphi 0, %s42
      %s45 = sphi 0, %s44
      %s59 = sphi 0, %s45
      %s71 = sphi 0, %s73
      %s74 = sphi 0, %s71
      %s75 = sphi 0, %s74
      %s91 = sphi 0, %s75
      %s97 = sphi 0, %s99
      %s100 = sphi 0, %s97
      %s101 = sphi 0, %s100
      %s117 = sphi 0, %s101
      %s121 = sphi 0, %s121
      %s123 = sphi 0, %s121
      %s124 = sphi 0, %s123
      %s138 = sphi 0, %s124
    $region4: #{fully_connected_forward.1} parent=1 // loop_header_branch
      %16 = sbr.rel (%p14) target = $region8
    $region5: #{fully_connected_forward.1} parent=1 // loop_body
      %s18 = ssub.s32 %s13, 1
      %s19 = ssub.s32 %s13, 2
      %s20 = sadd.s32 %s13, 1
      %s22 = sadd.s32 %s21, 1
      %p25 = scmp.eq.s32.totalorder %s13, 2
      %p26 = scmp.ne.s32.totalorder %s21, %s23
      %p27 = scmp.eq.s32.totalorder %s13, 0
      %p28 = por %p26, %p27
      %p29 = scmp.ne.s32.totalorder %s21, %s23
      %p30 = scmp.eq.s32.totalorder %s18, 2
      %p31 = por %p29, %p30
      %p32 = scmp.ne.s32.totalorder %s23, %s24
      %p33 = scmp.eq.s32.totalorder %s18, 0
      %p34 = por %p32, %p33
      %p35 = scmp.ne.s32.totalorder %s23, %s24
      %p36 = scmp.eq.s32.totalorder %s19, 2
      %p37 = por %p35, %p36
      %p39 = scmp.ne.s32.totalorder %s24, %s38
      %p40 = scmp.eq.s32.totalorder %s19, 0
      %p41 = por %p39, %p40
      %s43 = sadd.s32 %s42, 1
      %p46 = scmp.eq.s32.totalorder %s13, 2
      %p47 = scmp.ne.s32.totalorder %s42, %s44
      %p48 = scmp.eq.s32.totalorder %s13, 0
      %p49 = por %p47, %p48
      %p50 = scmp.ne.s32.totalorder %s42, %s44
      %p51 = scmp.eq.s32.totalorder %s18, 2
      %p52 = por %p50, %p51
      %p53 = scmp.ne.s32.totalorder %s44, %s45
      %p54 = scmp.eq.s32.totalorder %s18, 0
      %p55 = por %p53, %p54
      %p56 = scmp.ne.s32.totalorder %s44, %s45
      %p57 = scmp.eq.s32.totalorder %s19, 2
      %p58 = por %p56, %p57
      %p60 = scmp.ne.s32.totalorder %s45, %s59
      %p61 = scmp.eq.s32.totalorder %s19, 0
      %p62 = por %p60, %p61
      %s63 = ssub.s32 %s13, 1
      %p64 = scmp.gt.s32.totalorder %s63, 0
      %s65 = scalar_select %p64, %s63, 0
      %s66 = ssub.s32 %s20, 1
      %p67 = scmp.gt.s32.totalorder %s66, 0
      %s68 = scalar_select %p67, %s66, 0
      %s69 = ssub.s32 %s65, %s68
      %p70 = scmp.eq.s32.totalorder %s69, 0
      %s72 = sadd.s32 %s71, 1
      %s73 = scalar_select %p70, %s71, %s72
      %p76 = pneg %p70
      %p77 = scmp.eq.s32.totalorder %s13, 2
      %p78 = por %p76, %p77
      %p79 = scmp.ne.s32.totalorder %s71, %s74
      %p80 = scmp.eq.s32.totalorder %s13, 0
      %p81 = por %p79, %p80
      %p82 = scmp.ne.s32.totalorder %s71, %s74
      %p83 = scmp.eq.s32.totalorder %s18, 2
      %p84 = por %p82, %p83
      %p85 = scmp.ne.s32.totalorder %s74, %s75
      %p86 = scmp.eq.s32.totalorder %s18, 0
      %p87 = por %p85, %p86
      %p88 = scmp.ne.s32.totalorder %s74, %s75
      %p89 = scmp.eq.s32.totalorder %s19, 2
      %p90 = por %p88, %p89
      %p92 = scmp.ne.s32.totalorder %s75, %s91
      %p93 = scmp.eq.s32.totalorder %s19, 0
      %p94 = por %p92, %p93
      %s95 = ssub.s32 %s13, %s20
      %p96 = scmp.eq.s32.totalorder %s95, 0
      %s98 = sadd.s32 %s97, 1
      %s99 = scalar_select %p96, %s97, %s98
      %p102 = pneg %p96
      %p103 = scmp.eq.s32.totalorder %s13, 2
      %p104 = por %p102, %p103
      %p105 = scmp.ne.s32.totalorder %s97, %s100
      %p106 = scmp.eq.s32.totalorder %s13, 0
      %p107 = por %p105, %p106
      %p108 = scmp.ne.s32.totalorder %s97, %s100
      %p109 = scmp.eq.s32.totalorder %s18, 2
      %p110 = por %p108, %p109
      %p111 = scmp.ne.s32.totalorder %s100, %s101
      %p112 = scmp.eq.s32.totalorder %s18, 0
      %p113 = por %p111, %p112
      %p114 = scmp.ne.s32.totalorder %s100, %s101
      %p115 = scmp.eq.s32.totalorder %s19, 2
      %p116 = por %p114, %p115
      %p118 = scmp.ne.s32.totalorder %s101, %s117
      %p119 = scmp.eq.s32.totalorder %s19, 0
      %p120 = por %p118, %p119
      %s122 = sadd.s32 %s121, 1
      %p125 = scmp.eq.s32.totalorder %s13, 2
      %p126 = scmp.ne.s32.totalorder %s121, %s123
      %p127 = scmp.eq.s32.totalorder %s13, 0
      %p128 = por %p126, %p127
      %p129 = scmp.ne.s32.totalorder %s121, %s123
      %p130 = scmp.eq.s32.totalorder %s18, 2
      %p131 = por %p129, %p130
      %p132 = scmp.ne.s32.totalorder %s123, %s124
      %p133 = scmp.eq.s32.totalorder %s18, 0
      %p134 = por %p132, %p133
      %p135 = scmp.ne.s32.totalorder %s123, %s124
      %p136 = scmp.eq.s32.totalorder %s19, 2
      %p137 = por %p135, %p136
      %p139 = scmp.ne.s32.totalorder %s124, %s138
      %p140 = scmp.eq.s32.totalorder %s19, 0
      %p141 = por %p139, %p140
      %p142 = scmp.le.s32.totalorder 1, %s13
      %p143 = scmp.lt.s32.totalorder %s13, 4
      %p144 = pnand %p142, %p143
      %p145 = pneg %p144
      // Predicated region
      $region9: #{fully_connected_forward.1} parent=5 // pred_check
        _
      $region10: #{fully_connected_forward.1} parent=5 // pred_check_branch
        %147 = sbr.rel (%p144) target = $region12
      $region11: #{fully_connected_forward.1} parent=5 // pred_region
        %s148 = ssub.s32 %s13, 1
        // Predicated region
        $region13: #{fully_connected_forward.1} parent=11 // pred_check
          %p149 = pneg %p34
        $region14: #{fully_connected_forward.1} parent=11 // pred_check_branch
          %151 = sbr.rel (%p149) target = $region16
        $region15: #{fully_connected_forward.1} parent=11 // pred_region
          _
        $region16: #{fully_connected_forward.1} parent=11 // pred_fallthru
          _
        // Predicated region
        $region17: #{fully_connected_forward.1} parent=11 // pred_check
          %p152 = pneg %p55
        $region18: #{fully_connected_forward.1} parent=11 // pred_check_branch
          %154 = sbr.rel (%p152) target = $region20
        $region19: #{fully_connected_forward.1} parent=11 // pred_region
          _
        $region20: #{fully_connected_forward.1} parent=11 // pred_fallthru
          _
      $region12: #{fully_connected_forward.1} parent=5 // pred_fallthru
        _
      %p155 = scmp.lt.s32.totalorder %s13, 3
      // Predicated region
      $region21: #{fully_connected_forward.1} parent=5 // pred_check
        %p156 = pneg %p155
      $region22: #{fully_connected_forward.1} parent=5 // pred_check_branch
        %158 = sbr.rel (%p156) target = $region24
      $region23: #{fully_connected_forward.1} parent=5 // pred_region
        // Predicated region
        $region25: #{fully_connected_forward.1} parent=23 // pred_check
          %p159 = pneg %p81
        $region26: #{fully_connected_forward.1} parent=23 // pred_check_branch
          %161 = sbr.rel (%p159) target = $region28
        $region27: #{fully_connected_forward.1} parent=23 // pred_region
          %s162 = sand.u32 %s71, 1
          %s163 = scalar_lea.sflag [#allocation4], %s162
          %s164 = sand.u32 %s71, 1
          %s165 = smul.addr %s164, 64
          %s166 = scalar_lea.vmem [#allocation3], %s165
          %s167 = ssub.s32 %s13, 1
          %p168 = scmp.gt.s32.totalorder %s167, 0
          %s169 = scalar_select %p168, %s167, 0
          %s171 = ssub.s32 1024, 1024
          %172 = vsyncadd %s163, %s171
          %s173 = smul.addr %s169, 16
          %s174 = smul.addr %s173, 64
          %s175 = scalar_lea.hbm %s2, %s174
          %s176 = sshll.u32 %s166, 4
          %s177 = int_to_ptr.vmem [resolvable:$true] %s176
          %182 = dma.hbm_to_vmem [thread:$0]  %s175, 1024, %s177, %s163, 64, 64, 4
        $region28: #{fully_connected_forward.1} parent=23 // pred_fallthru
          _
        // Predicated region
        $region29: #{fully_connected_forward.1} parent=23 // pred_check
          %p183 = pneg %p107
        $region30: #{fully_connected_forward.1} parent=23 // pred_check_branch
          %185 = sbr.rel (%p183) target = $region32
        $region31: #{fully_connected_forward.1} parent=23 // pred_region
          %p186 = scmp.lt.s32.totalorder %s13, 2
          %s187 = scalar_select %p186, %s13, 2
          %s188 = scalar_lea.vmem %s3, %s187
        $region32: #{fully_connected_forward.1} parent=23 // pred_fallthru
          _
      $region24: #{fully_connected_forward.1} parent=5 // pred_fallthru
        _
      %p189 = scmp.le.s32.totalorder 1, %s13
      %p190 = scmp.lt.s32.totalorder %s13, 4
      %p191 = pnand %p189, %p190
      %p192 = pneg %p191
      // Predicated region
      $region33: #{fully_connected_forward.1} parent=5 // pred_check
        _
      $region34: #{fully_connected_forward.1} parent=5 // pred_check_branch
        %194 = sbr.rel (%p191) target = $region36
      $region35: #{fully_connected_forward.1} parent=5 // pred_region
        %s195 = ssub.s32 %s13, 1
        %s196 = sand.u32 %s74, 1
        %s197 = scalar_lea.sflag [#allocation4], %s196
        %s198 = sand.u32 %s74, 1
        %s199 = smul.addr %s198, 64
        %s200 = scalar_lea.vmem [#allocation3], %s199
        // Predicated region
        $region37: #{fully_connected_forward.1} parent=35 // pred_check
          %p201 = pneg %p87
        $region38: #{fully_connected_forward.1} parent=35 // pred_check_branch
          %203 = sbr.rel (%p201) target = $region40
        $region39: #{fully_connected_forward.1} parent=35 // pred_region
          %204 = dma.done %s197, 1024
        $region40: #{fully_connected_forward.1} parent=35 // pred_fallthru
          _
        %p205 = pneg %p34
        %p206 = pneg %p31
        %p207 = pneg %p55
        %p208 = pneg %p52
        %s209 = sand.u32 %s74, 1
        %s210 = scalar_lea.sflag [#allocation4], %s209
        %s211 = sand.u32 %s74, 1
        %s212 = smul.addr %s211, 64
        %s213 = scalar_lea.vmem [#allocation3], %s212
        %p214 = pneg %p87
        %p215 = pneg %p84
        %p216 = scmp.lt.s32.totalorder %s18, 2
        %s217 = scalar_select %p216, %s18, 2
        %s218 = scalar_lea.vmem %s3, %s217
        %p219 = pneg %p113
        %p220 = pneg %p110
        %p221 = pneg %p134
        %p222 = pneg %p131
        %s223 = ssub.s32 %s18, 1
        %p224 = scmp.gt.s32.totalorder %s223, 0
        %s225 = scalar_select %p224, %s223, 0
        %p226 = scmp.lt.s32.totalorder %s18, 2
        %s227 = scalar_select %p226, %s18, 2
        %s228 = scalar_lea.vmem %s3, %s227
        %v230 = vld [vmem:[%s228] sm:$0x1]
        %p231 = scmp.eq.s32.totalorder %s18, 0
        // Predicated region
        $region41: #{fully_connected_forward.1} parent=35 // pred_check
          %p232 = pneg %p231
        $region42: #{fully_connected_forward.1} parent=35 // pred_check_branch
          %234 = sbr.rel (%p232) target = $region44
        $region43: #{fully_connected_forward.1} parent=35 // pred_region
          %v235 = vld [vmem:[%s0] sm:$0xf]
          %v236 = vld [vmem:[%s0 + $0x4] sm:$0xf]
          %v237 = vld [vmem:[%s1] sm:$0xf]
          %v238 = vld [vmem:[%s1 + $0x4] sm:$0xf]
          %v239 = vld [vmem:[%s1 + $0x8] sm:$0xf]
          %v240 = vld [vmem:[%s1 + $0xc] sm:$0xf]
          %v242 = vlaneseq
          %v243 = vshrl.u32 %v242, 7
          %v244 = vsub.s32 0, %v243
          %v245 = vrot.slane %v230, %v244
          %v249 = vunpack.c.l.b16 %v235
          %v250 = vunpack.c.l.b16 %v236
          %v251 = vpack.c.b16 %v250, %v249
          %v256 = vunpack.c.l.b16 %v237
          %v257 = vunpack.c.l.b16 %v238
          %v258 = vunpack.c.l.b16 %v239
          %v259 = vunpack.c.l.b16 %v240
          %v260 = vpack.c.b16 %v257, %v256
          %v261 = vpack.c.b16 %v259, %v258
          %vm264 = vcmask 261120
          %v266 = vsel %vm264, %v251, 0
          %268 = vmatprep.subr.bf16.mxu0 0
          %269 = vmatpush1.bf16.msra.mxu0 0
          %270 = vmatprep.subr.bf16.mxu0 0
          %271 = vmatpush1.bf16.msra.mxu0 0
          %272 = vmatprep.subr.bf16.mxu0 0
          %273 = vmatpush1.bf16.msra.mxu0 0
          %274 = vmatprep.subr.bf16.mxu0 0
          %275 = vmatpush1.bf16.msra.mxu0 0
          %276 = vmatprep.subr.bf16.mxu0 0
          %277 = vmatpush1.bf16.msra.mxu0 0
          %278 = vmatprep.subr.bf16.mxu0 0
          %279 = vmatpush1.bf16.msra.mxu0 0
          %280 = vmatprep.subr.bf16.mxu0 0
          %281 = vmatpush1.bf16.msra.mxu0 %v261
          %282 = vmatprep.subr.bf16.mxu0 0
          %283 = vmatpush1.bf16.msra.mxu0 %v260
          %284 = vmatprep.subr.bf16.mxu0 0
          %285 = vmatpush2.bf16.msra.mxu0 0
          %286 = vmatprep.subr.bf16.mxu0 0
          %287 = vmatpush2.bf16.msra.mxu0 0
          %288 = vmatprep.subr.bf16.mxu0 0
          %289 = vmatpush2.bf16.msra.mxu0 0
          %290 = vmatprep.subr.bf16.mxu0 0
          %291 = vmatpush2.bf16.msra.mxu0 0
          %292 = vmatprep.subr.bf16.mxu0 0
          %293 = vmatpush2.bf16.msra.mxu0 0
          %294 = vmatprep.subr.bf16.mxu0 0
          %295 = vmatpush2.bf16.msra.mxu0 0
          %296 = vmatprep.subr.bf16.mxu0 0
          %297 = vmatpush2.bf16.msra.mxu0 0
          %298 = vmatprep.subr.bf16.mxu0 0
          %299 = vmatpush2.bf16.msra.mxu0 0
          %300 = vmatprep.mubr.bf16.mxu0 0
          %301 = vmatmul.mubr.bf16.gmra.mxu0 %v266
          %v302 = vpop.f32.mrf.mxu0
          %v303 = vadd.f32 %v245, %v302
          %v304 = vpop.f32.mrf.mxu0
          %v305 = vpop.f32.mrf.mxu0
          %v306 = vadd.f32 %v245, %v305
          %v307 = vpop.f32.mrf.mxu0
          %308 = vdwg.mxu0
          %v309 = vmul.f32 %v303, 0.01
          %v310 = vmul.f32 %v306, 0.01
          %v311 = vmax.f32 %v303, %v309
          %v312 = vmax.f32 %v306, %v310
          %313 = vst [vmem:[#allocation2] sm:$0xff] %v311
          %314 = vst [vmem:[#allocation2 + $0x8] sm:$0xff] %v312
        $region44: #{fully_connected_forward.1} parent=35 // pred_fallthru
          _
        %p315 = scmp.gt.s32.totalorder %s18, 0
        // Predicated region
        $region45: #{fully_connected_forward.1} parent=35 // pred_check
          %p316 = pneg %p315
        $region46: #{fully_connected_forward.1} parent=35 // pred_check_branch
          %318 = sbr.rel (%p316) target = $region48
        $region47: #{fully_connected_forward.1} parent=35 // pred_region
          %v319 = vld [vmem:[#allocation2] sm:$0xff]
          %v320 = vld [vmem:[#allocation2 + $0x8] sm:$0xff]
          %v321 = vpack.c.bf16 %v320, %v319
          %v322 = vld [vmem:[%s200] sm:$0xf]
          %v323 = vld [vmem:[%s200 + $0x4] sm:$0xf]
          %v324 = vld [vmem:[%s200 + $0x8] sm:$0xf]
          %v325 = vld [vmem:[%s200 + $0xc] sm:$0xf]
          %v326 = vld [vmem:[%s200 + $0x10] sm:$0xf]
          %v327 = vld [vmem:[%s200 + $0x14] sm:$0xf]
          %v328 = vld [vmem:[%s200 + $0x18] sm:$0xf]
          %v329 = vld [vmem:[%s200 + $0x1c] sm:$0xf]
          %v330 = vld [vmem:[%s200 + $0x20] sm:$0xf]
          %v331 = vld [vmem:[%s200 + $0x24] sm:$0xf]
          %v332 = vld [vmem:[%s200 + $0x28] sm:$0xf]
          %v333 = vld [vmem:[%s200 + $0x2c] sm:$0xf]
          %v334 = vld [vmem:[%s200 + $0x30] sm:$0xf]
          %v335 = vld [vmem:[%s200 + $0x34] sm:$0xf]
          %v336 = vld [vmem:[%s200 + $0x38] sm:$0xf]
          %v337 = vld [vmem:[%s200 + $0x3c] sm:$0xf]
          %v339 = vlaneseq
          %v340 = vshrl.u32 %v339, 7
          %v341 = vsub.s32 0, %v340
          %v342 = vrot.slane %v230, %v341
          %v360 = vunpack.c.l.b16 %v322
          %v361 = vunpack.c.l.b16 %v323
          %v362 = vunpack.c.l.b16 %v324
          %v363 = vunpack.c.l.b16 %v325
          %v364 = vunpack.c.l.b16 %v326
          %v365 = vunpack.c.l.b16 %v327
          %v366 = vunpack.c.l.b16 %v328
          %v367 = vunpack.c.l.b16 %v329
          %v368 = vunpack.c.l.b16 %v330
          %v369 = vunpack.c.l.b16 %v331
          %v370 = vunpack.c.l.b16 %v332
          %v371 = vunpack.c.l.b16 %v333
          %v372 = vunpack.c.l.b16 %v334
          %v373 = vunpack.c.l.b16 %v335
          %v374 = vunpack.c.l.b16 %v336
          %v375 = vunpack.c.l.b16 %v337
          %v376 = vpack.c.b16 %v361, %v360
          %v377 = vpack.c.b16 %v363, %v362
          %v378 = vpack.c.b16 %v365, %v364
          %v379 = vpack.c.b16 %v367, %v366
          %v380 = vpack.c.b16 %v369, %v368
          %v381 = vpack.c.b16 %v371, %v370
          %v382 = vpack.c.b16 %v373, %v372
          %v383 = vpack.c.b16 %v375, %v374
          %392 = vmatprep.subr.bf16.mxu0 0
          %393 = vmatpush1.bf16.msra.mxu0 %v383
          %394 = vmatprep.subr.bf16.mxu0 0
          %395 = vmatpush1.bf16.msra.mxu0 %v382
          %396 = vmatprep.subr.bf16.mxu0 0
          %397 = vmatpush1.bf16.msra.mxu0 %v381
          %398 = vmatprep.subr.bf16.mxu0 0
          %399 = vmatpush1.bf16.msra.mxu0 %v380
          %400 = vmatprep.subr.bf16.mxu0 0
          %401 = vmatpush1.bf16.msra.mxu0 %v379
          %402 = vmatprep.subr.bf16.mxu0 0
          %403 = vmatpush1.bf16.msra.mxu0 %v378
          %404 = vmatprep.subr.bf16.mxu0 0
          %405 = vmatpush1.bf16.msra.mxu0 %v377
          %406 = vmatprep.subr.bf16.mxu0 0
          %407 = vmatpush1.bf16.msra.mxu0 %v376
          %408 = vmatprep.subr.bf16.mxu0 0
          %409 = vmatpush2.bf16.msra.mxu0 0
          %410 = vmatprep.subr.bf16.mxu0 0
          %411 = vmatpush2.bf16.msra.mxu0 0
          %412 = vmatprep.subr.bf16.mxu0 0
          %413 = vmatpush2.bf16.msra.mxu0 0
          %414 = vmatprep.subr.bf16.mxu0 0
          %415 = vmatpush2.bf16.msra.mxu0 0
          %416 = vmatprep.subr.bf16.mxu0 0
          %417 = vmatpush2.bf16.msra.mxu0 0
          %418 = vmatprep.subr.bf16.mxu0 0
          %419 = vmatpush2.bf16.msra.mxu0 0
          %420 = vmatprep.subr.bf16.mxu0 0
          %421 = vmatpush2.bf16.msra.mxu0 0
          %422 = vmatprep.subr.bf16.mxu0 0
          %423 = vmatpush2.bf16.msra.mxu0 0
          %424 = vmatprep.mubr.bf16.mxu0 0
          %425 = vmatmul.mubr.bf16.gmra.mxu0 %v321
          %v426 = vpop.f32.mrf.mxu0
          %v427 = vadd.f32 %v342, %v426
          %v428 = vpop.f32.mrf.mxu0
          %v429 = vpop.f32.mrf.mxu0
          %v430 = vadd.f32 %v342, %v429
          %v431 = vpop.f32.mrf.mxu0
          %432 = vdwg.mxu0
          %v433 = vmul.f32 %v427, 0.01
          %v434 = vmul.f32 %v430, 0.01
          %v435 = vmax.f32 %v427, %v433
          %v436 = vmax.f32 %v430, %v434
          %437 = vst [vmem:[#allocation2] sm:$0xff] %v435
          %438 = vst [vmem:[#allocation2 + $0x8] sm:$0xff] %v436
        $region48: #{fully_connected_forward.1} parent=35 // pred_fallthru
          _
        %p439 = scmp.eq.s32.totalorder %s18, 2
        // Predicated region
        $region49: #{fully_connected_forward.1} parent=35 // pred_check
          %p440 = pneg %p439
        $region50: #{fully_connected_forward.1} parent=35 // pred_check_branch
          %442 = sbr.rel (%p440) target = $region52
        $region51: #{fully_connected_forward.1} parent=35 // pred_region
          %v443 = vld [vmem:[#allocation2] sm:$0xff]
          %v444 = vld [vmem:[#allocation2 + $0x8] sm:$0xff]
          %445 = vst [vmem:[%s4] sm:$0xff] %v443
          %446 = vst [vmem:[%s4 + $0x8] sm:$0xff] %v444
        $region52: #{fully_connected_forward.1} parent=35 // pred_fallthru
          _
        // Predicated region
        $region53: #{fully_connected_forward.1} parent=35 // pred_check
          %p447 = pneg %p131
        $region54: #{fully_connected_forward.1} parent=35 // pred_check_branch
          %449 = sbr.rel (%p447) target = $region56
        $region55: #{fully_connected_forward.1} parent=35 // pred_region
          _
        $region56: #{fully_connected_forward.1} parent=35 // pred_fallthru
          _
        // Predicated region
        $region57: #{fully_connected_forward.1} parent=35 // pred_check
          %p450 = pneg %p131
        $region58: #{fully_connected_forward.1} parent=35 // pred_check_branch
          %452 = sbr.rel (%p450) target = $region60
        $region59: #{fully_connected_forward.1} parent=35 // pred_region
          _
        $region60: #{fully_connected_forward.1} parent=35 // pred_fallthru
          _
      $region36: #{fully_connected_forward.1} parent=5 // pred_fallthru
        _
      %p453 = scmp.le.s32.totalorder 2, %s13
      // Predicated region
      $region61: #{fully_connected_forward.1} parent=5 // pred_check
        %p454 = pneg %p453
      $region62: #{fully_connected_forward.1} parent=5 // pred_check_branch
        %456 = sbr.rel (%p454) target = $region64
      $region63: #{fully_connected_forward.1} parent=5 // pred_region
        %s457 = ssub.s32 %s13, 2
      $region64: #{fully_connected_forward.1} parent=5 // pred_fallthru
        _
    $region6: #{fully_connected_forward.1} parent=1 // loop_footer
      %s17 = sadd.s32 1, %s13
    $region7: #{fully_connected_forward.1} parent=1 // loop_footer_branch
      %12 = sbr.rel target = $region3
    $region8: #{fully_connected_forward.1} parent=1 // loop_exit
      _
    %458 = vsyncpa [#allocation4], 1
    %s459 = scalar_lea.sflag [#allocation4], 1
    %460 = vsyncpa %s459, 1

</llo_original>
